<compile_context>
chip_gen: v7x
topology: tpu7x:2x2x1
jax: 0.10.0
libtpu: 0.0.40
codegen_flags: <defaults>
</compile_context>

<pallas_src>
import functools
import math

import numpy as np
import jax
import jax.numpy as jnp
from jax import lax
from jax.experimental import pallas as pl
from jax.experimental.pallas import tpu as pltpu

EMBED_DIM = 128
NHEAD = 16                      # hard-coded in TFEncoder
HEAD_DIM = EMBED_DIM // NHEAD
FFN_DIM = 2048                  # PyTorch TransformerEncoderLayer default dim_feedforward
NUM_TF_LAYERS = 2
LN_EPS = 1e-5
TM = 256                        # row tile for gridded matmul kernels

VMEM = pltpu.MemorySpace.VMEM


def _vspecs(n):
    return [pl.BlockSpec(memory_space=VMEM) for _ in range(n)]


# ----------------------------------------------------------------------------
# Row-tiled linear (+ fused activation)
# ----------------------------------------------------------------------------
def _linear_kernel(x_ref, w_ref, b_ref, o_ref, *, act):
    y = jnp.dot(x_ref[...], w_ref[...], preferred_element_type=jnp.float32) + b_ref[...]
    if act == "tanh":
        y = jnp.tanh(y)
    elif act == "relu":
        y = jnp.maximum(y, 0.0)
    o_ref[...] = y


def linear(x, w, b, act=None):
    """y = act(x @ w + b); x:(M,K) w:(K,N) b:(N,). Grid over rows."""
    M, K = x.shape
    N = w.shape[1]
    bm = M if M <= TM else TM
    grid = (pl.cdiv(M, bm),)
    return pl.pallas_call(
        functools.partial(_linear_kernel, act=act),
        out_shape=jax.ShapeDtypeStruct((M, N), jnp.float32),
        grid=grid,
        in_specs=[pl.BlockSpec((bm, K), lambda i: (i, 0)),
                  pl.BlockSpec((K, N), lambda i: (0, 0)),
                  pl.BlockSpec((1, N), lambda i: (0, 0))],
        out_specs=pl.BlockSpec((bm, N), lambda i: (i, 0)),
        compiler_params=pltpu.CompilerParams(dimension_semantics=("parallel",)),
    )(x, w, b.reshape(1, N))


# ----------------------------------------------------------------------------
# linear -> +residual -> LayerNorm (fused), row-tiled
# ----------------------------------------------------------------------------
def _linear_add_ln_kernel(x_ref, res_ref, w_ref, b_ref, g_ref, beta_ref, o_ref):
    y = jnp.dot(x_ref[...], w_ref[...], preferred_element_type=jnp.float32) + b_ref[...]
    h = res_ref[...] + y
    mu = jnp.mean(h, axis=-1, keepdims=True)
    var = jnp.mean((h - mu) ** 2, axis=-1, keepdims=True)
    o_ref[...] = (h - mu) * lax.rsqrt(var + LN_EPS) * g_ref[...] + beta_ref[...]


def linear_add_ln(x, res, w, b, g, beta):
    M, K = x.shape
    N = w.shape[1]
    bm = M if M <= TM else TM
    grid = (pl.cdiv(M, bm),)
    return pl.pallas_call(
        _linear_add_ln_kernel,
        out_shape=jax.ShapeDtypeStruct((M, N), jnp.float32),
        grid=grid,
        in_specs=[pl.BlockSpec((bm, K), lambda i: (i, 0)),
                  pl.BlockSpec((bm, N), lambda i: (i, 0)),
                  pl.BlockSpec((K, N), lambda i: (0, 0)),
                  pl.BlockSpec((1, N), lambda i: (0, 0)),
                  pl.BlockSpec((1, N), lambda i: (0, 0)),
                  pl.BlockSpec((1, N), lambda i: (0, 0))],
        out_specs=pl.BlockSpec((bm, N), lambda i: (i, 0)),
        compiler_params=pltpu.CompilerParams(dimension_semantics=("parallel",)),
    )(x, res, w, b.reshape(1, N), g.reshape(1, N), beta.reshape(1, N))


# ----------------------------------------------------------------------------
# FFN block fused: LN(x + relu(x@w1+b1)@w2 + b2), row-tiled
# ----------------------------------------------------------------------------
def _ffn_add_ln_kernel(x_ref, w1_ref, b1_ref, w2_ref, b2_ref, g_ref, beta_ref, o_ref):
    x = x_ref[...]
    h1 = jnp.maximum(
        jnp.dot(x, w1_ref[...], preferred_element_type=jnp.float32) + b1_ref[...], 0.0)
    h = x + jnp.dot(h1, w2_ref[...], preferred_element_type=jnp.float32) + b2_ref[...]
    mu = jnp.mean(h, axis=-1, keepdims=True)
    var = jnp.mean((h - mu) ** 2, axis=-1, keepdims=True)
    o_ref[...] = (h - mu) * lax.rsqrt(var + LN_EPS) * g_ref[...] + beta_ref[...]


def ffn_add_ln(x, w1, b1, w2, b2, g, beta):
    M, E = x.shape
    F = w1.shape[1]
    bm = M if M <= TM else TM
    grid = (pl.cdiv(M, bm),)
    return pl.pallas_call(
        _ffn_add_ln_kernel,
        out_shape=jax.ShapeDtypeStruct((M, E), jnp.float32),
        grid=grid,
        in_specs=[pl.BlockSpec((bm, E), lambda i: (i, 0)),
                  pl.BlockSpec((E, F), lambda i: (0, 0)),
                  pl.BlockSpec((1, F), lambda i: (0, 0)),
                  pl.BlockSpec((F, E), lambda i: (0, 0)),
                  pl.BlockSpec((1, E), lambda i: (0, 0)),
                  pl.BlockSpec((1, E), lambda i: (0, 0)),
                  pl.BlockSpec((1, E), lambda i: (0, 0))],
        out_specs=pl.BlockSpec((bm, E), lambda i: (i, 0)),
        compiler_params=pltpu.CompilerParams(dimension_semantics=("parallel",)),
    )(x, w1, b1.reshape(1, F), w2, b2.reshape(1, E), g.reshape(1, E), beta.reshape(1, E))


# ----------------------------------------------------------------------------
# Bidirectional masked GRU: both directions in ONE kernel, one fused matmul / step,
# lane-dense (T, B, 2H) output store per step.
# ----------------------------------------------------------------------------
def _bigru_kernel(xg_ref, whh_ref, bhh_ref, h0_ref, m_ref, out_ref, hf_ref):
    # xg_ref : (T, B, 6H)  gate pre-activations, gate-major [r|z|n], each gate [fwd H | rev H];
    #          forward half at time t, reverse half at time T-1-t (pre-flipped).
    # whh_ref: (2H, 6H) block-structured hidden weights; bhh_ref: (1, 6H)
    # h0_ref : (B, 2H)   [fwd | rev] initial hidden
    # m_ref  : (T, B, 2H) mask (fwd half at t, rev half at T-1-t)
    T = xg_ref.shape[0]
    H2 = h0_ref.shape[1]        # 2H == EMBED_DIM

    def body(t, h):
        g = jnp.dot(h, whh_ref[...], preferred_element_type=jnp.float32) + bhh_ref[...]
        xg = xg_ref[t]
        r = jax.nn.sigmoid(xg[:, :H2] + g[:, :H2])
        z = jax.nn.sigmoid(xg[:, H2:2 * H2] + g[:, H2:2 * H2])
        n = jnp.tanh(xg[:, 2 * H2:] + r * g[:, 2 * H2:])
        h_new = (1.0 - z) * n + z * h
        m = m_ref[t]
        h = m * h_new + (1.0 - m) * h      # freeze hidden past each length
        out_ref[t] = h * m                 # padded positions -> 0 (pad_packed semantics)
        return h

    hf_ref[...] = lax.fori_loop(0, T, body, h0_ref[...])


def bi_gru(seq, lens, p, key):
    """Packed-sequence-equivalent bidirectional GRU. seq:(B,T,E) -> ((B,T,E),(B,E))."""
    B, T, E = seq.shape
    H = E // 2
    h0 = jax.random.normal(key, (B, E), dtype=jnp.float32)   # torch.randn hidden (fwd|rev)

    mask = (jnp.arange(T)[None, :] < lens[:, None]).astype(jnp.float32)   # (B, T)
    mt = mask.T                                                            # (T, B)
    m_comb = jnp.concatenate(
        [jnp.broadcast_to(mt[:, :, None], (T, B, H)),
         jnp.broadcast_to(mt[::-1][:, :, None], (T, B, H))], axis=-1)      # (T, B, 2H)

    # One input projection for both directions: columns [fwd r,z,n | rev r,z,n]
    xg_all = linear(seq.reshape(B * T, E), p["w_ih"], p["b_ih"]).reshape(B, T, 2, 3, H)
    xg_f = xg_all[:, :, 0]                      # (B, T, 3, H)
    xg_r = xg_all[:, :, 1][:, ::-1]             # time-flipped reverse gates
    xg = jnp.stack([xg_f, xg_r], axis=3)        # (B, T, 3, 2, H)
    xg = xg.transpose(1, 0, 2, 3, 4).reshape(T, B, 6 * H)

    out, hf = pl.pallas_call(
        _bigru_kernel,
        out_shape=(jax.ShapeDtypeStruct((T, B, E), jnp.float32),
                   jax.ShapeDtypeStruct((B, E), jnp.float32)),
        in_specs=_vspecs(5),
        out_specs=(pl.BlockSpec(memory_space=VMEM),
                   pl.BlockSpec(memory_space=VMEM)),
    )(xg, p["w_hh"], p["b_hh"], h0, m_comb)

    # forward half already time-aligned; reverse half was computed at T-1-t -> flip back.
    seq_out = jnp.concatenate([out[:, :, :H], out[::-1, :, H:]], axis=-1).transpose(1, 0, 2)
    return seq_out, hf


# ----------------------------------------------------------------------------
# SeqAttn core (mask, scores, softmax, weighted sum)
# ----------------------------------------------------------------------------
def _seqattn_kernel(s_ref, mask_ref, ctx_ref, o_ref):
    s = s_ref[...] * mask_ref[...][:, :, None]                 # (B, L, E)
    scores = jnp.sum(s * ctx_ref[...][:, None, :], axis=-1)    # (B, L)
    m = jnp.max(scores, axis=-1, keepdims=True)
    e = jnp.exp(scores - m)
    probs = e * pl.reciprocal(jnp.sum(e, axis=-1, keepdims=True), approx=True)
    o_ref[...] = jnp.sum(s * probs[:, :, None], axis=1)


def seq_attn(seq, lens, p, dcontext=None):
    B, L, E = seq.shape
    mask = (jnp.arange(L)[None, :] < lens[:, None]).astype(jnp.float32)
    s = linear(seq.reshape(B * L, E), p["w_fc"], p["b_fc"], act="tanh").reshape(B, L, E)
    if dcontext is None:
        ctx = jnp.broadcast_to(p["context"].reshape(1, E), (B, E))
    else:
        ctx = dcontext
    return pl.pallas_call(
        _seqattn_kernel,
        out_shape=jax.ShapeDtypeStruct((B, E), jnp.float32),
        in_specs=_vspecs(3),
        out_specs=pl.BlockSpec(memory_space=VMEM),
    )(s, mask, ctx)


# Batched-context attention over a SHARED (pre-masked, pre-tanh'ed) sequence encoding.
# s:(C,L,E) shared charge-sentence encoding, ctx:(N,E) one context per fact row.
def _ctx_attn_kernel(s_ref, ctx_ref, o_ref):
    C, L, E = s_ref.shape
    N = ctx_ref.shape[0]
    s = s_ref[...]
    ctx_b = jnp.broadcast_to(ctx_ref[...][None, :, :], (C, N, E))
    scores = jnp.einsum("cne,cle->cnl", ctx_b, s, preferred_element_type=jnp.float32)
    m = jnp.max(scores, axis=-1, keepdims=True)
    e = jnp.exp(scores - m)
    probs = e * pl.reciprocal(jnp.sum(e, axis=-1, keepdims=True), approx=True)
    o_ref[...] = jnp.einsum("cnl,cle->cne", probs, s, preferred_element_type=jnp.float32)


def ctx_attn(s, ctx):
    C, L, E = s.shape
    N = ctx.shape[0]
    return pl.pallas_call(
        _ctx_attn_kernel,
        out_shape=jax.ShapeDtypeStruct((C, N, E), jnp.float32),
        in_specs=_vspecs(2),
        out_specs=pl.BlockSpec(memory_space=VMEM),
    )(s, ctx)


# ----------------------------------------------------------------------------
# Multi-head scaled dot-product attention core (scale pre-folded into q)
# ----------------------------------------------------------------------------
def _attn_core_kernel(q_ref, k_ref, v_ref, o_ref):
    s = jnp.einsum("bqd,bkd->bqk", q_ref[...], k_ref[...],
                   preferred_element_type=jnp.float32)
    m = jnp.max(s, axis=-1, keepdims=True)
    e = jnp.exp(s - m)
    p = e * pl.reciprocal(jnp.sum(e, axis=-1, keepdims=True), approx=True)
    o_ref[...] = jnp.einsum("bqk,bkd->bqd", p, v_ref[...],
                            preferred_element_type=jnp.float32)


def attn_core(q, k, v):
    return pl.pallas_call(
        _attn_core_kernel,
        out_shape=jax.ShapeDtypeStruct(q.shape, jnp.float32),
        in_specs=_vspecs(3),
        out_specs=pl.BlockSpec(memory_space=VMEM),
    )(q, k, v)


# ----------------------------------------------------------------------------
# Transformer encoder (batch_first=False semantics, like the PyTorch default)
# ----------------------------------------------------------------------------
def tf_layer(x, p):
    # x: (S, N, E); attention mixes over dim 0 (seq), dim 1 is the batch.
    S, N, E = x.shape
    x2 = x.reshape(S * N, E)
    qkv = linear(x2, p["in_proj_w"], p["in_proj_b"]).reshape(S, N, 3, NHEAD, HEAD_DIM)
    scale = 1.0 / math.sqrt(HEAD_DIM)
    q = (qkv[:, :, 0] * scale).transpose(1, 2, 0, 3).reshape(N * NHEAD, S, HEAD_DIM)
    k = qkv[:, :, 1].transpose(1, 2, 0, 3).reshape(N * NHEAD, S, HEAD_DIM)
    v = qkv[:, :, 2].transpose(1, 2, 0, 3).reshape(N * NHEAD, S, HEAD_DIM)
    a = attn_core(q, k, v)
    a = a.reshape(N, NHEAD, S, HEAD_DIM).transpose(2, 0, 1, 3).reshape(S * N, E)
    h = linear_add_ln(a, x2, p["out_proj_w"], p["out_proj_b"], p["ln1_g"], p["ln1_b"])
    h = ffn_add_ln(h, p["w1"], p["b1"], p["w2"], p["b2"], p["ln2_g"], p["ln2_b"])
    return h.reshape(S, N, E)


def tf_encoder(seq, lens, p, context=None):
    x = seq * math.sqrt(EMBED_DIM)
    for lp in p["layers"]:
        x = tf_layer(x, lp)
    return seq_attn(x, lens, p["attn"], context)


# ----------------------------------------------------------------------------
# Glue
# ----------------------------------------------------------------------------
def split_gather_indices(lens_np):
    """torch.split + pad_sequence(batch_first=True) as a single gather (host precompute)."""
    lens = [int(v) for v in lens_np]
    max_l = max(lens)
    offs = np.concatenate([[0], np.cumsum(lens)[:-1]]).astype(np.int64)
    idx = np.zeros((len(lens), max_l), np.int32)
    msk = np.zeros((len(lens), max_l), np.float32)
    for d, (o, l) in enumerate(zip(offs, lens)):
        idx[d, :l] = np.arange(o, o + l)
        msk[d, :l] = 1.0
    return jnp.asarray(idx), jnp.asarray(msk)


def bce_with_logits(logits, targets, pos_weight):
    # TODO(synk): elementwise BCE-with-logits kept in plain JAX glue (tiny op).
    l = pos_weight[None, :] * targets * jax.nn.softplus(-logits) \
        + (1.0 - targets) * jax.nn.softplus(logits)
    return jnp.mean(l)


# ----------------------------------------------------------------------------
# Full `Proposed.forward`
# ----------------------------------------------------------------------------
def proposed_forward(params, batch, charge_text, charge_sent_lens, charge_doc_lens, keys):
    E = EMBED_DIM
    num_labels = params["classifier_w"].shape[1]
    sent_lens = batch["sent_lens"]
    doc_lens = batch["doc_lens"]
    num_cdocs = int(charge_doc_lens.shape[0])

    # Host-side static max lengths (computed once up-front; no mid-graph device sync).
    t_sent = int(np.max(np.asarray(sent_lens)))
    t_csent = int(np.max(np.asarray(charge_sent_lens)))
    fdoc_idx, fdoc_mask = split_gather_indices(np.asarray(doc_lens))
    cdoc_idx, cdoc_mask = split_gather_indices(np.asarray(charge_doc_lens))

    facts = params["embedding"][batch["fact_text"]][:, :t_sent]       # (F, Ts, E)
    charges = params["embedding"][charge_text][:, :t_csent]           # (C, Tc, E)

    # ---- fact HAN -----------------------------------------------------------
    fe = params["fact_encoder"]
    enc_fs, _ = bi_gru(facts, sent_lens, fe["sent"]["rnn"], keys[0])
    fact_sents = seq_attn(enc_fs, sent_lens, fe["sent"]["attn"])       # (F, E)
    fdocs = fact_sents[fdoc_idx] * fdoc_mask[:, :, None]               # (Dn, max_fd, E)
    enc_fd, _ = bi_gru(fdocs, doc_lens, fe["doc"]["rnn"], keys[1])
    facts_doc = seq_attn(enc_fd, doc_lens, fe["doc"]["attn"])          # (Dn, E)

    # ---- charge sentence-level encoding: HOISTED, shared by both branches ---
    ce = params["charge_encoder"]
    enc_cs, _ = bi_gru(charges, charge_sent_lens, ce["sent"]["rnn"], keys[2])   # (C, Tc, E)
    Lc = enc_cs.shape[1]
    c_mask = (jnp.arange(Lc)[None, :] < charge_sent_lens[:, None]).astype(jnp.float32)
    s_c = linear(enc_cs.reshape(-1, E), ce["sent"]["attn"]["w_fc"],
                 ce["sent"]["attn"]["b_fc"], act="tanh").reshape(enc_cs.shape)
    s_c = s_c * c_mask[:, :, None]                                     # masked tanh(fc(enc))

    def charge_branch(fact_rep, key):
        n = fact_rep.shape[0]
        sent_ctx = linear(fact_rep, params["sent_context_w"], params["sent_context_b"])
        doc_ctx = linear(fact_rep, params["doc_context_w"], params["doc_context_b"])
        charge_ctx = linear(fact_rep, params["charge_context_w"], params["charge_context_b"])

        # context-dependent attention over the shared charge-sentence encoding
        enc_sents = ctx_attn(s_c, sent_ctx).transpose(1, 0, 2)          # (n, C, E)

        # split charge sentences into charge documents (one gather, no tiling)
        docs = enc_sents[:, cdoc_idx, :] * cdoc_mask[None, :, :, None]  # (n, D, max_cd, E)
        max_cd = docs.shape[2]
        docs = docs.reshape(n * num_cdocs, max_cd, E)
        cd_lens = jnp.tile(charge_doc_lens, n)
        enc_cd, _ = bi_gru(docs, cd_lens, ce["doc"]["rnn"], key)
        doc_ctx_rep = jnp.repeat(doc_ctx, num_cdocs, axis=0)
        enc = seq_attn(enc_cd, cd_lens, ce["doc"]["attn"], doc_ctx_rep)  # (n*D, E)
        enc = enc.reshape(n, num_cdocs, E)

        agg_lens = jnp.full((n,), num_labels, dtype=jnp.int32)
        agg = tf_encoder(enc, agg_lens, params["charge_aggregator"], charge_ctx)
        logits = linear(jnp.concatenate([fact_rep, agg], axis=1),
                        params["classifier_w"], params["classifier_b"])
        # dropout: identity (eval mode)
        return logits

    sent_logits = charge_branch(fact_sents, keys[3])
    doc_logits = charge_branch(facts_doc, keys[4])

    loss = 0.0
    if "sent_labels" in batch:
        loss = loss + bce_with_logits(sent_logits, batch["sent_labels"], params["sent_label_wts"])
    if "doc_labels" in batch:
        loss = loss + bce_with_logits(doc_logits, batch["doc_labels"], params["doc_label_wts"])

    return {
        "loss": loss,
        "sent_preds": (jax.nn.sigmoid(sent_logits) > 0.5).astype(jnp.float32),
        "doc_preds": (jax.nn.sigmoid(doc_logits) > 0.5).astype(jnp.float32),
    }


# ----------------------------------------------------------------------------
# Deterministic parameter initialization (shapes follow the nn.Module __init__)
# ----------------------------------------------------------------------------
def _init_linear(key, fan_in, fan_out):
    k1, k2 = jax.random.split(key)
    w = jax.random.normal(k1, (fan_in, fan_out), jnp.float32) * (1.0 / math.sqrt(fan_in))
    b = jax.random.normal(k2, (fan_out,), jnp.float32) * 0.01
    return w, b


def _init_gru(key, E):
    """Bidirectional GRU params pre-assembled in the fused/combined layout."""
    H = E // 2
    ks = jax.random.split(key, 8)
    w_ih, b_ih = [], []
    w_hh = jnp.zeros((E, 3 * E), jnp.float32)       # (2H, 6H) block-structured
    b_hh = jnp.zeros((1, 3 * E), jnp.float32)
    for d in range(2):
        w_ih.append(jax.random.normal(ks[4 * d + 0], (E, 3 * H), jnp.float32) / math.sqrt(E))
        b_ih.append(jax.random.normal(ks[4 * d + 1], (3 * H,), jnp.float32) * 0.01)
        whh_d = jax.random.normal(ks[4 * d + 2], (3, H, H), jnp.float32) / math.sqrt(H)
        bhh_d = jax.random.normal(ks[4 * d + 3], (3, H), jnp.float32) * 0.01
        for g in range(3):
            c0 = g * 2 * H + d * H
            w_hh = w_hh.at[d * H:(d + 1) * H, c0:c0 + H].set(whh_d[g])
            b_hh = b_hh.at[0, c0:c0 + H].set(bhh_d[g])
    return {"w_ih": jnp.concatenate(w_ih, axis=1),   # (E, 6H) [fwd r,z,n | rev r,z,n]
            "b_ih": jnp.concatenate(b_ih, axis=0),   # (6H,)
            "w_hh": w_hh, "b_hh": b_hh}


def _init_seqattn(key, E):
    k1, k2 = jax.random.split(key)
    w, b = _init_linear(k1, E, E)
    return {"w_fc": w, "b_fc": b, "context": jax.random.uniform(k2, (E,), jnp.float32)}


def _init_rnn_encoder(key, E):
    k1, k2 = jax.random.split(key)
    return {"rnn": _init_gru(k1, E), "attn": _init_seqattn(k2, E)}


def _init_han(key, E):
    k1, k2 = jax.random.split(key)
    return {"sent": _init_rnn_encoder(k1, E), "doc": _init_rnn_encoder(k2, E)}


def _init_tf_layer(key, E):
    ks = jax.random.split(key, 4)
    in_w, in_b = _init_linear(ks[0], E, 3 * E)
    out_w, out_b = _init_linear(ks[1], E, E)
    w1, b1 = _init_linear(ks[2], E, FFN_DIM)
    w2, b2 = _init_linear(ks[3], FFN_DIM, E)
    return {"in_proj_w": in_w, "in_proj_b": in_b,
            "out_proj_w": out_w, "out_proj_b": out_b,
            "w1": w1, "b1": b1, "w2": w2, "b2": b2,
            "ln1_g": jnp.ones((E,), jnp.float32), "ln1_b": jnp.zeros((E,), jnp.float32),
            "ln2_g": jnp.ones((E,), jnp.float32), "ln2_b": jnp.zeros((E,), jnp.float32)}


def _init_tf_encoder(key, E):
    ks = jax.random.split(key, NUM_TF_LAYERS + 1)
    return {"layers": [_init_tf_layer(ks[i], E) for i in range(NUM_TF_LAYERS)],
            "attn": _init_seqattn(ks[-1], E)}


def init_params(key, vocab_size, E, num_labels):
    ks = jax.random.split(key, 8)
    sc_w, sc_b = _init_linear(ks[1], E, E)
    dc_w, dc_b = _init_linear(ks[2], E, E)
    cc_w, cc_b = _init_linear(ks[3], E, E)
    cl_w, cl_b = _init_linear(ks[4], 2 * E, num_labels)
    return {
        "embedding": jax.random.normal(ks[0], (vocab_size, E), jnp.float32) * 0.1,
        "fact_encoder": _init_han(ks[5], E),
        "charge_encoder": _init_han(ks[6], E),
        "charge_aggregator": _init_tf_encoder(ks[7], E),
        "sent_context_w": sc_w, "sent_context_b": sc_b,
        "doc_context_w": dc_w, "doc_context_b": dc_b,
        "charge_context_w": cc_w, "charge_context_b": cc_b,
        "classifier_w": cl_w, "classifier_b": cl_b,
        "sent_label_wts": jnp.ones((num_labels,), jnp.float32),
        "doc_label_wts": jnp.ones((num_labels,), jnp.float32),
    }


# ----------------------------------------------------------------------------
# Demo run
# ----------------------------------------------------------------------------
if __name__ == "__main__":
    key = jax.random.PRNGKey(0)
    vocab_size = 50
    num_labels = 3                 # == number of charge "documents"

    # fact side: 6 sentences forming 2 documents
    num_fsents, max_sent_len = 6, 10
    sent_lens = jnp.array([10, 7, 5, 10, 8, 6], jnp.int32)
    doc_lens = jnp.array([4, 2], jnp.int32)

    # charge side: 5 sentences forming 3 charge documents (= labels)
    num_csents, max_charge_len = 5, 8
    charge_sent_lens = jnp.array([8, 6, 5, 8, 7], jnp.int32)
    charge_doc_lens = jnp.array([2, 1, 2], jnp.int32)

    k_params, k_t1, k_t2, k_l1, k_l2, k_hid = jax.random.split(key, 6)
    params = init_params(k_params, vocab_size, EMBED_DIM, num_labels)

    fact_text = jax.random.randint(k_t1, (num_fsents, max_sent_len), 0, vocab_size, jnp.int32)
    charge_text = jax.random.randint(k_t2, (num_csents, max_charge_len), 0, vocab_size, jnp.int32)
    sent_labels = (jax.random.uniform(k_l1, (num_fsents, num_labels)) > 0.5).astype(jnp.float32)
    doc_labels = (jax.random.uniform(k_l2, (doc_lens.shape[0], num_labels)) > 0.5).astype(jnp.float32)

    batch = {"fact_text": fact_text, "sent_lens": sent_lens, "doc_lens": doc_lens,
             "sent_labels": sent_labels, "doc_labels": doc_labels}

    hidden_keys = list(jax.random.split(k_hid, 5))   # deterministic BiRNN hidden init keys

    out = proposed_forward(params, batch, charge_text, charge_sent_lens, charge_doc_lens, hidden_keys)
    jax.block_until_ready(out["loss"])
    jax.block_until_ready(out["sent_preds"])
    jax.block_until_ready(out["doc_preds"])
    print("KERNEL_OK")
</pallas_src>

<mosaic_0001>
module attributes {stable_mosaic.version = 11 : i64} {
  func.func @_linear_kernel(%arg0: i32, %arg1: memref<60x128xf32, #tpu.memory_space<vmem>>, %arg2: memref<128x384xf32, #tpu.memory_space<vmem>>, %arg3: memref<1x384xf32, #tpu.memory_space<vmem>>, %arg4: memref<60x384xf32, #tpu.memory_space<vmem>>) attributes {dimension_semantics = [#tpu.dimension_semantics<parallel>], iteration_bounds = array<i64: 1>, scalar_prefetch = 0 : i64, scratch_operands = 0 : i64, tpu.core_type = #tpu.core_type<tc>, window_params = [{transform_indices = @transform_0, window_bounds = array<i64: 60, 128>}, {pipeline_mode = #tpu.pipeline_mode<synchronous>, transform_indices = @transform_1, window_bounds = array<i64: 128, 384>}, {pipeline_mode = #tpu.pipeline_mode<synchronous>, transform_indices = @transform_2, window_bounds = array<i64: 1, 384>}, {transform_indices = @transform_3, window_bounds = array<i64: 60, 384>}]} {
    %c0 = arith.constant 0 : index
    %c0_0 = arith.constant 0 : index
    %0 = vector.load %arg1[%c0, %c0_0] : memref<60x128xf32, #tpu.memory_space<vmem>>, vector<60x128xf32>
    %c0_1 = arith.constant 0 : index
    %c0_2 = arith.constant 0 : index
    %1 = vector.load %arg2[%c0_1, %c0_2] : memref<128x384xf32, #tpu.memory_space<vmem>>, vector<128x384xf32>
    %cst = arith.constant dense<0.000000e+00> : vector<60x384xf32>
    %2 = tpu.matmul %0, %1, %cst {dimension_numbers = #tpu.dot_dimension_numbers<[1], [0], [0], [1], [0, 0, 1, 1], [], []>} : vector<60x128xf32>, vector<128x384xf32>, vector<60x384xf32> -> vector<60x384xf32>
    %c0_3 = arith.constant 0 : index
    %c0_4 = arith.constant 0 : index
    %3 = vector.load %arg3[%c0_3, %c0_4] : memref<1x384xf32, #tpu.memory_space<vmem>>, vector<1x384xf32>
    %4 = vector.broadcast %3 : vector<1x384xf32> to vector<60x384xf32>
    %5 = arith.addf %2, %4 : vector<60x384xf32>
    %c0_5 = arith.constant 0 : index
    %c0_6 = arith.constant 0 : index
    %6 = vector.load %arg4[%c0_5, %c0_6] : memref<60x384xf32, #tpu.memory_space<vmem>>, vector<60x384xf32>
    tpu.vector_store %arg4[%c0_5, %c0_6], %5 {strides = array<i32>} : memref<60x384xf32, #tpu.memory_space<vmem>>, vector<60x384xf32>,
    return
  }
  func.func @transform_0(%arg0: i32) -> (i32, i32) {
    %c0_i32 = arith.constant 0 : i32
    %c0_i32_0 = arith.constant 0 : i32
    return %arg0, %c0_i32 : i32, i32
  }
  func.func @transform_1(%arg0: i32) -> (i32, i32) {
    %c0_i32 = arith.constant 0 : i32
    %c0_i32_0 = arith.constant 0 : i32
    %c0_i32_1 = arith.constant 0 : i32
    return %c0_i32, %c0_i32_0 : i32, i32
  }
  func.func @transform_2(%arg0: i32) -> (i32, i32) {
    %c0_i32 = arith.constant 0 : i32
    %c0_i32_0 = arith.constant 0 : i32
    %c0_i32_1 = arith.constant 0 : i32
    return %c0_i32, %c0_i32_0 : i32, i32
  }
  func.func @transform_3(%arg0: i32) -> (i32, i32) {
    %c0_i32 = arith.constant 0 : i32
    %c0_i32_0 = arith.constant 0 : i32
    return %arg0, %c0_i32 : i32, i32
  }
}

</mosaic_0001>

<llo_original>
// kernel: tpu_custom_call.1
$region0: #{tpu_custom_call.1}
  #allocation0 [shape = 'u32[]', space=smem, size = 0x4, offset = 0x4, fixed_abs, tag = 'smem constant byte address 0x4 - core index']
  #allocation1 [shape = 'u32[144,128]{1,0:T(1,128)}', space=vmem, size = 0x12000, scoped, tag = 'internal scratch']
  %s0 = inlined_call_operand.hbm [shape: f32[60,128], index: 0, kind: input, shape index: {}]
  %s1 = inlined_call_operand.hbm [shape: f32[128,384], index: 1, kind: input, shape index: {}]
  %s2 = inlined_call_operand.vmem [shape: f32[1,384], index: 2, kind: input, shape index: {}]
  %s3 = inlined_call_operand.hbm [shape: f32[60,384], index: 3, kind: output, shape index: {}]
  %s4 = sld [smem:[#allocation0]]
  $region30: #{tpu_custom_call.1} parent=0
    _
  %s6 = ssub.s32 1, %s4
  %s7 = scalar_select 0, %s6, %s4
  $region1: #{tpu_custom_call.1} parent=0
    #allocation2 [shape = 'u8[32768]{0}', space=vmem, size = 0x8000, scoped, tag = 'input window, operand 0, single buffered']
    #allocation3 [shape = 's32[1]{0}', space=sflag, size = 0x4, scoped, tag = 'scoped memory for tpu_custom_call.1']
    #allocation4 [shape = 's32[1]{0}', space=sflag, size = 0x4, scoped, tag = 'scoped memory for tpu_custom_call.1']
    #allocation5 [shape = 'u8[196608]{0}', space=vmem, size = 0x30000, scoped, tag = 'input window, operand 1, single buffered']
    #allocation6 [shape = 's32[1]{0}', space=sflag, size = 0x4, scoped, tag = 'scoped memory for tpu_custom_call.1']
    #allocation7 [shape = 'u8[98304]{0}', space=vmem, size = 0x18000, scoped, tag = 'output window, operand 0, single buffered']
    %8 = vsyncpa [#allocation3], 0
    %9 = vsyncpa [#allocation6], 0
    %10 = vsyncpa [#allocation4], 0
    // Predicated region
    $region2: #{tpu_custom_call.1} parent=1 // pred_check
      _
    $region3: #{tpu_custom_call.1} parent=1 // pred_check_branch
      %12 = sbr.rel (0) target = $region5
    $region4: #{tpu_custom_call.1} parent=1 // pred_region
      %s14 = ssub.s32 1024, 1024
      %15 = vsyncadd [#allocation3], %s14
      %s16 = sshll.u32 [#allocation2], 4
      %s17 = int_to_ptr.vmem [resolvable:$true] %s16
      %22 = dma.hbm_to_vmem [thread:$0]  %s0, 1024, %s17, [#allocation3], 128, 128, 8
    $region5: #{tpu_custom_call.1} parent=1 // pred_fallthru
      _
    // Predicated region
    $region6: #{tpu_custom_call.1} parent=1 // pred_check
      _
    $region7: #{tpu_custom_call.1} parent=1 // pred_check_branch
      %24 = sbr.rel (0) target = $region9
    $region8: #{tpu_custom_call.1} parent=1 // pred_region
      %s26 = ssub.s32 6144, 6144
      %27 = vsyncadd [#allocation6], %s26
      %s28 = sshll.u32 [#allocation5], 4
      %s29 = int_to_ptr.vmem [resolvable:$true] %s28
      %34 = dma.hbm_to_vmem [thread:$0]  %s1, 6144, %s29, [#allocation6], 384, 384, 24
    $region9: #{tpu_custom_call.1} parent=1 // pred_fallthru
      _
    // Predicated region
    $region10: #{tpu_custom_call.1} parent=1 // pred_check
      _
    $region11: #{tpu_custom_call.1} parent=1 // pred_check_branch
      %36 = sbr.rel (0) target = $region13
    $region12: #{tpu_custom_call.1} parent=1 // pred_region
      _
    $region13: #{tpu_custom_call.1} parent=1 // pred_fallthru
      _
    // Predicated region
    $region14: #{tpu_custom_call.1} parent=1 // pred_check
      _
    $region15: #{tpu_custom_call.1} parent=1 // pred_check_branch
      %38 = sbr.rel (0) target = $region17
    $region16: #{tpu_custom_call.1} parent=1 // pred_region
      %39 = dma.done [#allocation3], 1024
    $region17: #{tpu_custom_call.1} parent=1 // pred_fallthru
      _
    // Predicated region
    $region18: #{tpu_custom_call.1} parent=1 // pred_check
      _
    $region19: #{tpu_custom_call.1} parent=1 // pred_check_branch
      %41 = sbr.rel (0) target = $region21
    $region20: #{tpu_custom_call.1} parent=1 // pred_region
      %42 = dma.done [#allocation6], 6144
    $region21: #{tpu_custom_call.1} parent=1 // pred_fallthru
      _
    %v43 = vld [vmem:[#allocation2] sm:$0xff]
    %v44 = vld [vmem:[#allocation2 + $0x8] sm:$0xff]
    %v45 = vld [vmem:[#allocation2 + $0x10] sm:$0xff]
    %v46 = vld [vmem:[#allocation2 + $0x18] sm:$0xff]
    %v47 = vld [vmem:[#allocation2 + $0x20] sm:$0xff]
    %v48 = vld [vmem:[#allocation2 + $0x28] sm:$0xff]
    %v49 = vld [vmem:[#allocation2 + $0x30] sm:$0xff]
    %v50 = vld [vmem:[#allocation2 + $0x38] sm:$0xf]
    %v51 = vld [vmem:[#allocation5] sm:$0xff]
    %v52 = vld [vmem:[#allocation5 + $0x8] sm:$0xff]
    %v53 = vld [vmem:[#allocation5 + $0x10] sm:$0xff]
    %v54 = vld [vmem:[#allocation5 + $0x18] sm:$0xff]
    %v55 = vld [vmem:[#allocation5 + $0x20] sm:$0xff]
    %v56 = vld [vmem:[#allocation5 + $0x28] sm:$0xff]
    %v57 = vld [vmem:[#allocation5 + $0x30] sm:$0xff]
    %v58 = vld [vmem:[#allocation5 + $0x38] sm:$0xff]
    %v59 = vld [vmem:[#allocation5 + $0x40] sm:$0xff]
    %v60 = vld [vmem:[#allocation5 + $0x48] sm:$0xff]
    %v61 = vld [vmem:[#allocation5 + $0x50] sm:$0xff]
    %v62 = vld [vmem:[#allocation5 + $0x58] sm:$0xff]
    %v63 = vld [vmem:[#allocation5 + $0x60] sm:$0xff]
    %v64 = vld [vmem:[#allocation5 + $0x68] sm:$0xff]
    %v65 = vld [vmem:[#allocation5 + $0x70] sm:$0xff]
    %v66 = vld [vmem:[#allocation5 + $0x78] sm:$0xff]
    %v67 = vld [vmem:[#allocation5 + $0x80] sm:$0xff]
    %v68 = vld [vmem:[#allocation5 + $0x88] sm:$0xff]
    %v69 = vld [vmem:[#allocation5 + $0x90] sm:$0xff]
    %v70 = vld [vmem:[#allocation5 + $0x98] sm:$0xff]
    %v71 = vld [vmem:[#allocation5 + $0xa0] sm:$0xff]
    %v72 = vld [vmem:[#allocation5 + $0xa8] sm:$0xff]
    %v73 = vld [vmem:[#allocation5 + $0xb0] sm:$0xff]
    %v74 = vld [vmem:[#allocation5 + $0xb8] sm:$0xff]
    %v75 = vld [vmem:[#allocation5 + $0xc0] sm:$0xff]
    %v76 = vld [vmem:[#allocation5 + $0xc8] sm:$0xff]
    %v77 = vld [vmem:[#allocation5 + $0xd0] sm:$0xff]
    %v78 = vld [vmem:[#allocation5 + $0xd8] sm:$0xff]
    %v79 = vld [vmem:[#allocation5 + $0xe0] sm:$0xff]
    %v80 = vld [vmem:[#allocation5 + $0xe8] sm:$0xff]
    %v81 = vld [vmem:[#allocation5 + $0xf0] sm:$0xff]
    %v82 = vld [vmem:[#allocation5 + $0xf8] sm:$0xff]
    %v83 = vld [vmem:[#allocation5 + $0x100] sm:$0xff]
    %v84 = vld [vmem:[#allocation5 + $0x108] sm:$0xff]
    %v85 = vld [vmem:[#allocation5 + $0x110] sm:$0xff]
    %v86 = vld [vmem:[#allocation5 + $0x118] sm:$0xff]
    %v87 = vld [vmem:[#allocation5 + $0x120] sm:$0xff]
    %v88 = vld [vmem:[#allocation5 + $0x128] sm:$0xff]
    %v89 = vld [vmem:[#allocation5 + $0x130] sm:$0xff]
    %v90 = vld [vmem:[#allocation5 + $0x138] sm:$0xff]
    %v91 = vld [vmem:[#allocation5 + $0x140] sm:$0xff]
    %v92 = vld [vmem:[#allocation5 + $0x148] sm:$0xff]
    %v93 = vld [vmem:[#allocation5 + $0x150] sm:$0xff]
    %v94 = vld [vmem:[#allocation5 + $0x158] sm:$0xff]
    %v95 = vld [vmem:[#allocation5 + $0x160] sm:$0xff]
    %v96 = vld [vmem:[#allocation5 + $0x168] sm:$0xff]
    %v97 = vld [vmem:[#allocation5 + $0x170] sm:$0xff]
    %v98 = vld [vmem:[#allocation5 + $0x178] sm:$0xff]
    %v99 = vld [vmem:[%s2] sm:$0x7]
    %v101 = vlaneseq
    %v102 = vshrl.u32 %v101, 7
    %v103 = vsub.s32 0, %v102
    %v104 = vrot.slane %v99, %v103
    %v105 = vlaneseq
    %v106 = vshrl.u32 %v105, 7
    %v107 = vsub.s32 1, %v106
    %v108 = vrot.slane %v99, %v107
    %v109 = vlaneseq
    %v110 = vshrl.u32 %v109, 7
    %v111 = vsub.s32 2, %v110
    %v112 = vrot.slane %v99, %v111
    %116 = vmatprep.subr.mxu0 %v52
    %117 = vmatpush1.msra.mxu0 %v51
    %118 = vmatprep.subr.mxu0 %v55
    %119 = vmatpush1.msra.mxu0 %v54
    %120 = vmatprep.subr.mxu0 %v58
    %121 = vmatpush1.msra.mxu0 %v57
    %122 = vmatprep.subr.mxu0 %v61
    %123 = vmatpush1.msra.mxu0 %v60
    %124 = vmatprep.subr.mxu0 %v64
    %125 = vmatpush1.msra.mxu0 %v63
    %126 = vmatprep.subr.mxu0 %v67
    %127 = vmatpush1.msra.mxu0 %v66
    %128 = vmatprep.subr.mxu0 %v70
    %129 = vmatpush1.msra.mxu0 %v69
    %130 = vmatprep.subr.mxu0 %v73
    %131 = vmatpush1.msra.mxu0 %v72
    %132 = vmatprep.subr.mxu0 %v76
    %133 = vmatpush1.msra.mxu0 %v75
    %134 = vmatprep.subr.mxu0 %v79
    %135 = vmatpush1.msra.mxu0 %v78
    %136 = vmatprep.subr.mxu0 %v82
    %137 = vmatpush1.msra.mxu0 %v81
    %138 = vmatprep.subr.mxu0 %v85
    %139 = vmatpush1.msra.mxu0 %v84
    %140 = vmatprep.subr.mxu0 %v88
    %141 = vmatpush1.msra.mxu0 %v87
    %142 = vmatprep.subr.mxu0 %v91
    %143 = vmatpush1.msra.mxu0 %v90
    %144 = vmatprep.subr.mxu0 %v94
    %145 = vmatpush1.msra.mxu0 %v93
    %146 = vmatprep.subr.mxu0 %v97
    %147 = vmatpush1.msra.mxu0 %v96
    %148 = vmatprep.subr.mxu0 0.0
    %149 = vmatpush1.msra.mxu0 0.0
    %150 = vmatprep.subr.mxu0 0.0
    %151 = vmatpush1.msra.mxu0 0.0
    %152 = vmatprep.subr.mxu0 0.0
    %153 = vmatpush1.msra.mxu0 0.0
    %154 = vmatprep.subr.mxu0 0.0
    %155 = vmatpush1.msra.mxu0 0.0
    %156 = vmatprep.subr.mxu0 0.0
    %157 = vmatpush1.msra.mxu0 0.0
    %158 = vmatprep.subr.mxu0 0.0
    %159 = vmatpush1.msra.mxu0 0.0
    %160 = vmatprep.subr.mxu0 0.0
    %161 = vmatpush1.msra.mxu0 0.0
    %162 = vmatprep.subr.mxu0 0.0
    %163 = vmatpush1.msra.mxu0 0.0
    %164 = vmatprep.subr.mxu0 0.0
    %165 = vmatpush1.msra.mxu0 0.0
    %166 = vmatprep.subr.mxu0 0.0
    %167 = vmatpush1.msra.mxu0 0.0
    %168 = vmatprep.subr.mxu0 0.0
    %169 = vmatpush1.msra.mxu0 0.0
    %170 = vmatprep.subr.mxu0 0.0
    %171 = vmatpush1.msra.mxu0 0.0
    %172 = vmatprep.subr.mxu0 0.0
    %173 = vmatpush1.msra.mxu0 0.0
    %174 = vmatprep.subr.mxu0 0.0
    %175 = vmatpush1.msra.mxu0 0.0
    %176 = vmatprep.subr.mxu0 0.0
    %177 = vmatpush1.msra.mxu0 0.0
    %178 = vmatprep.subr.mxu0 0.0
    %179 = vmatpush1.msra.mxu0 0.0
    %180 = vmatprep.mubr.f32.mxu0 0.0
    %181 = vmatmul.mubr.f32.gmra.mrb[0].mxu0 %v43
    %v182 = vpop.f32.mrb[0].mxu0
    %v183 = vadd.f32 %v104, %v182
    %v184 = vpop.f32.mrb[0].mxu0
    %v185 = vadd.f32 %v108, %v184
    %186 = vmatprep.mubr.f32.mxu0 0.0
    %187 = vmatmul.mubr.f32.gmra.mrb[0].mxu0 %v44
    %v188 = vpop.f32.mrb[0].mxu0
    %v189 = vadd.f32 %v104, %v188
    %v190 = vpop.f32.mrb[0].mxu0
    %v191 = vadd.f32 %v108, %v190
    %192 = vmatprep.mubr.f32.mxu0 0.0
    %193 = vmatmul.mubr.f32.gmra.mrb[0].mxu0 %v45
    %v194 = vpop.f32.mrb[0].mxu0
    %v195 = vadd.f32 %v104, %v194
    %v196 = vpop.f32.mrb[0].mxu0
    %v197 = vadd.f32 %v108, %v196
    %198 = vmatprep.mubr.f32.mxu0 0.0
    %199 = vmatmul.mubr.f32.gmra.mrb[0].mxu0 %v46
    %v200 = vpop.f32.mrb[0].mxu0
    %v201 = vadd.f32 %v104, %v200
    %v202 = vpop.f32.mrb[0].mxu0
    %v203 = vadd.f32 %v108, %v202
    %204 = vmatprep.mubr.f32.mxu0 0.0
    %205 = vmatmul.mubr.f32.gmra.mrb[0].mxu0 %v47
    %v206 = vpop.f32.mrb[0].mxu0
    %v207 = vadd.f32 %v104, %v206
    %v208 = vpop.f32.mrb[0].mxu0
    %v209 = vadd.f32 %v108, %v208
    %210 = vmatprep.mubr.f32.mxu0 0.0
    %211 = vmatmul.mubr.f32.gmra.mrb[0].mxu0 %v48
    %v212 = vpop.f32.mrb[0].mxu0
    %v213 = vadd.f32 %v104, %v212
    %v214 = vpop.f32.mrb[0].mxu0
    %v215 = vadd.f32 %v108, %v214
    %216 = vmatprep.mubr.f32.mxu0 0.0
    %217 = vmatmul.mubr.f32.gmra.mrb[0].mxu0 %v49
    %v218 = vpop.f32.mrb[0].mxu0
    %v219 = vadd.f32 %v104, %v218
    %v220 = vpop.f32.mrb[0].mxu0
    %v221 = vadd.f32 %v108, %v220
    %222 = vmatprep.mubr.f32.mxu0 0.0
    %223 = vmatmul.mubr.f32.gmra.mrb[0].mxu0 %v50
    %v224 = vpop.f32.mrb[0].mxu0
    %v225 = vadd.f32 %v104, %v224
    %v226 = vpop.f32.mrb[0].mxu0
    %v227 = vadd.f32 %v108, %v226
    %228 = vdwg.mxu0
    %229 = vmatprep.subr.mxu0 0.0
    %230 = vmatpush1.msra.mxu0 %v53
    %231 = vmatprep.subr.mxu0 0.0
    %232 = vmatpush1.msra.mxu0 %v56
    %233 = vmatprep.subr.mxu0 0.0
    %234 = vmatpush1.msra.mxu0 %v59
    %235 = vmatprep.subr.mxu0 0.0
    %236 = vmatpush1.msra.mxu0 %v62
    %237 = vmatprep.subr.mxu0 0.0
    %238 = vmatpush1.msra.mxu0 %v65
    %239 = vmatprep.subr.mxu0 0.0
    %240 = vmatpush1.msra.mxu0 %v68
    %241 = vmatprep.subr.mxu0 0.0
    %242 = vmatpush1.msra.mxu0 %v71
    %243 = vmatprep.subr.mxu0 0.0
    %244 = vmatpush1.msra.mxu0 %v74
    %245 = vmatprep.subr.mxu0 0.0
    %246 = vmatpush1.msra.mxu0 %v77
    %247 = vmatprep.subr.mxu0 0.0
    %248 = vmatpush1.msra.mxu0 %v80
    %249 = vmatprep.subr.mxu0 0.0
    %250 = vmatpush1.msra.mxu0 %v83
    %251 = vmatprep.subr.mxu0 0.0
    %252 = vmatpush1.msra.mxu0 %v86
    %253 = vmatprep.subr.mxu0 0.0
    %254 = vmatpush1.msra.mxu0 %v89
    %255 = vmatprep.subr.mxu0 0.0
    %256 = vmatpush1.msra.mxu0 %v92
    %257 = vmatprep.subr.mxu0 0.0
    %258 = vmatpush1.msra.mxu0 %v95
    %259 = vmatprep.subr.mxu0 0.0
    %260 = vmatpush1.msra.mxu0 %v98
    %261 = vmatprep.subr.mxu0 0.0
    %262 = vmatpush1.msra.mxu0 0.0
    %263 = vmatprep.subr.mxu0 0.0
    %264 = vmatpush1.msra.mxu0 0.0
    %265 = vmatprep.subr.mxu0 0.0
    %266 = vmatpush1.msra.mxu0 0.0
    %267 = vmatprep.subr.mxu0 0.0
    %268 = vmatpush1.msra.mxu0 0.0
    %269 = vmatprep.subr.mxu0 0.0
    %270 = vmatpush1.msra.mxu0 0.0
    %271 = vmatprep.subr.mxu0 0.0
    %272 = vmatpush1.msra.mxu0 0.0
    %273 = vmatprep.subr.mxu0 0.0
    %274 = vmatpush1.msra.mxu0 0.0
    %275 = vmatprep.subr.mxu0 0.0
    %276 = vmatpush1.msra.mxu0 0.0
    %277 = vmatprep.subr.mxu0 0.0
    %278 = vmatpush1.msra.mxu0 0.0
    %279 = vmatprep.subr.mxu0 0.0
    %280 = vmatpush1.msra.mxu0 0.0
    %281 = vmatprep.subr.mxu0 0.0
    %282 = vmatpush1.msra.mxu0 0.0
    %283 = vmatprep.subr.mxu0 0.0
    %284 = vmatpush1.msra.mxu0 0.0
    %285 = vmatprep.subr.mxu0 0.0
    %286 = vmatpush1.msra.mxu0 0.0
    %287 = vmatprep.subr.mxu0 0.0
    %288 = vmatpush1.msra.mxu0 0.0
    %289 = vmatprep.subr.mxu0 0.0
    %290 = vmatpush1.msra.mxu0 0.0
    %291 = vmatprep.subr.mxu0 0.0
    %292 = vmatpush1.msra.mxu0 0.0
    %293 = vmatprep.mubr.f32.mxu0 0.0
    %294 = vmatmul.mubr.f32.gmra.mrb[0].mxu0 %v43
    %v295 = vpop.f32.mrb[0].mxu0
    %v296 = vadd.f32 %v112, %v295
    %v297 = vpop.f32.mrb[0].mxu0
    %298 = vmatprep.mubr.f32.mxu0 0.0
    %299 = vmatmul.mubr.f32.gmra.mrb[0].mxu0 %v44
    %v300 = vpop.f32.mrb[0].mxu0
    %v301 = vadd.f32 %v112, %v300
    %v302 = vpop.f32.mrb[0].mxu0
    %303 = vmatprep.mubr.f32.mxu0 0.0
    %304 = vmatmul.mubr.f32.gmra.mrb[0].mxu0 %v45
    %v305 = vpop.f32.mrb[0].mxu0
    %v306 = vadd.f32 %v112, %v305
    %v307 = vpop.f32.mrb[0].mxu0
    %308 = vmatprep.mubr.f32.mxu0 0.0
    %309 = vmatmul.mubr.f32.gmra.mrb[0].mxu0 %v46
    %v310 = vpop.f32.mrb[0].mxu0
    %v311 = vadd.f32 %v112, %v310
    %v312 = vpop.f32.mrb[0].mxu0
    %313 = vmatprep.mubr.f32.mxu0 0.0
    %314 = vmatmul.mubr.f32.gmra.mrb[0].mxu0 %v47
    %v315 = vpop.f32.mrb[0].mxu0
    %v316 = vadd.f32 %v112, %v315
    %v317 = vpop.f32.mrb[0].mxu0
    %318 = vmatprep.mubr.f32.mxu0 0.0
    %319 = vmatmul.mubr.f32.gmra.mrb[0].mxu0 %v48
    %v320 = vpop.f32.mrb[0].mxu0
    %v321 = vadd.f32 %v112, %v320
    %v322 = vpop.f32.mrb[0].mxu0
    %323 = vmatprep.mubr.f32.mxu0 0.0
    %324 = vmatmul.mubr.f32.gmra.mrb[0].mxu0 %v49
    %v325 = vpop.f32.mrb[0].mxu0
    %v326 = vadd.f32 %v112, %v325
    %v327 = vpop.f32.mrb[0].mxu0
    %328 = vmatprep.mubr.f32.mxu0 0.0
    %329 = vmatmul.mubr.f32.gmra.mrb[0].mxu0 %v50
    %v330 = vpop.f32.mrb[0].mxu0
    %v331 = vadd.f32 %v112, %v330
    %v332 = vpop.f32.mrb[0].mxu0
    %333 = vdwg.mxu0
    %334 = vst [vmem:[#allocation7] sm:$0xff] %v183
    %335 = vst [vmem:[#allocation7 + $0x8] sm:$0xff] %v185
    %336 = vst [vmem:[#allocation7 + $0x10] sm:$0xff] %v296
    %337 = vst [vmem:[#allocation7 + $0x18] sm:$0xff] %v189
    %338 = vst [vmem:[#allocation7 + $0x20] sm:$0xff] %v191
    %339 = vst [vmem:[#allocation7 + $0x28] sm:$0xff] %v301
    %340 = vst [vmem:[#allocation7 + $0x30] sm:$0xff] %v195
    %341 = vst [vmem:[#allocation7 + $0x38] sm:$0xff] %v197
    %342 = vst [vmem:[#allocation7 + $0x40] sm:$0xff] %v306
    %343 = vst [vmem:[#allocation7 + $0x48] sm:$0xff] %v201
    %344 = vst [vmem:[#allocation7 + $0x50] sm:$0xff] %v203
    %345 = vst [vmem:[#allocation7 + $0x58] sm:$0xff] %v311
    %346 = vst [vmem:[#allocation7 + $0x60] sm:$0xff] %v207
    %347 = vst [vmem:[#allocation7 + $0x68] sm:$0xff] %v209
    %348 = vst [vmem:[#allocation7 + $0x70] sm:$0xff] %v316
    %349 = vst [vmem:[#allocation7 + $0x78] sm:$0xff] %v213
    %350 = vst [vmem:[#allocation7 + $0x80] sm:$0xff] %v215
    %351 = vst [vmem:[#allocation7 + $0x88] sm:$0xff] %v321
    %352 = vst [vmem:[#allocation7 + $0x90] sm:$0xff] %v219
    %353 = vst [vmem:[#allocation7 + $0x98] sm:$0xff] %v221
    %354 = vst [vmem:[#allocation7 + $0xa0] sm:$0xff] %v326
    %355 = vst [vmem:[#allocation7 + $0xa8] sm:$0xf] %v225
    %356 = vst [vmem:[#allocation7 + $0xb0] sm:$0xf] %v227
    %357 = vst [vmem:[#allocation7 + $0xb8] sm:$0xf] %v331
    // Predicated region
    $region22: #{tpu_custom_call.1} parent=1 // pred_check
      _
    $region23: #{tpu_custom_call.1} parent=1 // pred_check_branch
      %359 = sbr.rel (0) target = $region25
    $region24: #{tpu_custom_call.1} parent=1 // pred_region
      %s361 = ssub.s32 3072, 3072
      %362 = vsyncadd [#allocation4], %s361
      %s363 = sshll.u32 [#allocation7], 4
      %s364 = int_to_ptr.vmem [resolvable:$true] %s363
      %369 = dma.vmem_to_hbm [thread:$0]  %s364, 3072, %s3, [#allocation4], 384, 384, 24
    $region25: #{tpu_custom_call.1} parent=1 // pred_fallthru
      _
    // Predicated region
    $region26: #{tpu_custom_call.1} parent=1 // pred_check
      _
    $region27: #{tpu_custom_call.1} parent=1 // pred_check_branch
      %371 = sbr.rel (0) target = $region29
    $region28: #{tpu_custom_call.1} parent=1 // pred_region
      %372 = dma.done [#allocation4], 3072
    $region29: #{tpu_custom_call.1} parent=1 // pred_fallthru
      _
    %373 = vsyncpa [#allocation3], 1
    %374 = vsyncpa [#allocation6], 1
    %375 = vsyncpa [#allocation4], 1

</llo_original>
